<compile_context>
chip_gen: v7x
topology: tpu7x:2x2x1
jax: 0.10.0
libtpu: 0.0.40
codegen_flags: <defaults>
</compile_context>

<pallas_src>
import math

import jax
import jax.numpy as jnp
from jax.experimental import pallas as pl
from jax.experimental.pallas import tpu as pltpu


# ------------------------------ kernels --------------------------------------
def _make_toeplitz_kernel(K, H, pad, compute_dtype):
    """Small-C path. Refs per grid step:
      xp_ref : (TN, Hp, W*C)   H-halo-padded rows (W zero-pad folded into slab)
      w_ref  : (K, W*C, W*C)   block-Toeplitz slab per row tap
      b_ref  : (1, W*C)        bias tiled along W (f32)
      out_ref: (TN, H, W*C)
      acc_ref: (TN*H, W*C) f32 VMEM scratch accumulator
    """

    def kernel(xp_ref, w_ref, b_ref, out_ref, acc_ref):
        TN, _, WC = xp_ref.shape
        for di in range(K):                                  # K row taps (static)
            lhs = xp_ref[:, di:di + H, :].reshape(TN * H, WC)
            if compute_dtype is not None:
                lhs = lhs.astype(compute_dtype)              # MXU operand cast only
            contrib = jnp.dot(lhs, w_ref[di], preferred_element_type=jnp.float32)
            if di == 0:
                acc_ref[...] = contrib
            else:
                acc_ref[...] += contrib
        # Identity residual from the resident tile: same lane width, no offset,
        # original (un-downcast) dtype.
        res = xp_ref[:, pad:pad + H, :].reshape(TN * H, WC).astype(jnp.float32)
        y = acc_ref[...] + b_ref[...] + res                  # f32 epilogue (v5e safe)
        out_ref[...] = y.reshape(TN, H, WC).astype(out_ref.dtype)

    return kernel


def _make_per_tap_kernel(K, H, W, pad, compute_dtype):
    """Large-C path. Refs per grid step:
      xp_ref : (TN, Hp, Wp, C)  halo-padded NHWC tile
      w_ref  : (K*K, C, Co)     per-tap weights
      b_ref  : (1, Co)
      out_ref: (TN, H, W, Co)
      acc_ref: (TN*H*W, Co) f32 VMEM scratch accumulator
    """

    def kernel(xp_ref, w_ref, b_ref, out_ref, acc_ref):
        TN = xp_ref.shape[0]
        C = xp_ref.shape[-1]
        Co = out_ref.shape[-1]
        for di in range(K):
            for dj in range(K):
                lhs = xp_ref[:, di:di + H, dj:dj + W, :].reshape(TN * H * W, C)
                if compute_dtype is not None:
                    lhs = lhs.astype(compute_dtype)
                contrib = jnp.dot(lhs, w_ref[di * K + dj],
                                  preferred_element_type=jnp.float32)
                if di == 0 and dj == 0:
                    acc_ref[...] = contrib
                else:
                    acc_ref[...] += contrib
        res = xp_ref[:, pad:pad + H, pad:pad + W, :].reshape(TN * H * W, C)
        y = acc_ref[...] + b_ref[...] + res.astype(jnp.float32)
        out_ref[...] = y.reshape(TN, H, W, Co).astype(out_ref.dtype)

    return kernel


# --------------------------- host-side helpers --------------------------------
def _vmem_capacity_bytes():
    try:
        cap = getattr(pltpu.get_tpu_info(), "vmem_capacity_bytes", None)
        if cap:
            return int(cap)
    except Exception:
        pass
    return 64 << 20                      # conservative fallback (v7x per-core VMEM)


def _choose_images_per_step(N, per_img_bytes, fixed_bytes, budget_bytes):
    tn = (budget_bytes - fixed_bytes) // max(per_img_bytes, 1)
    tn = int(max(1, min(N, tn)))
    # Keep >= 2 grid steps: enough for double-buffer pipelining on 1-TC chips
    # and gives both v7x TensorCores work under dimension_semantics=("parallel",).
    if N >= 2:
        tn = min(tn, (N + 1) // 2)
    return tn


def _vmem_limit(required_bytes, cap_bytes):
    lim = max(int(required_bytes), 16 << 20)
    lim = min(lim, cap_bytes - (8 << 20))        # headroom under physical VMEM
    return int(lim)


def _pad_channels_for_lanes(W, C, max_ratio=2):
    """Smallest C_pad >= C with (W*C_pad) % 128 == 0, if the zero-pad overhead
    stays <= max_ratio x; otherwise keep C (correct, just not lane-dense)."""
    step = 128 // math.gcd(W, 128)
    c_pad = ((C + step - 1) // step) * step
    return c_pad if c_pad <= max_ratio * C else C


def _build_toeplitz_slabs(weight, W, pad):
    """weight (C_out, C_in, K, K) OIHW -> (K, W*C_in, W*C_out) row-tap slabs with
    the horizontal zero padding folded in (taps clipped at row boundaries):
        out[:, w*C_out + co] += row[:, wi*C_in + ci] * weight[co, ci, di, dj]
    for wi = w + dj - pad in [0, W)."""
    C_out, C_in, K, _ = weight.shape
    wi = jnp.arange(W)[:, None]
    wo = jnp.arange(W)[None, :]
    slabs = []
    for di in range(K):
        slab = jnp.zeros((W * C_in, W * C_out), dtype=weight.dtype)
        for dj in range(K):
            sel = (wi == wo + (dj - pad)).astype(weight.dtype)   # (W, W), clipped
            tap = weight[:, :, di, dj].T                          # (C_in, C_out)
            slab = slab + jnp.kron(sel, tap)
        slabs.append(slab)
    return jnp.stack(slabs, axis=0)


# ------------------------------ forward paths ---------------------------------
def _forward_toeplitz(x, weight, bias, compute_dtype, budget_bytes, cap_bytes):
    N, H, W, C = x.shape
    K = weight.shape[2]
    pad = K // 2
    Hp = H + 2 * pad

    # Lane-dense folding: pad channels so W*C_pad is a multiple of 128 when cheap.
    Cp = _pad_channels_for_lanes(W, C)
    if Cp != C:
        x = jnp.pad(x, ((0, 0), (0, 0), (0, 0), (0, Cp - C)))
        weight = jnp.pad(weight, ((0, Cp - C), (0, Cp - C), (0, 0), (0, 0)))
        bias = jnp.pad(bias, (0, Cp - C))
    WC = W * Cp

    # Only the H halo is materialized; the W halo is folded into the slab.
    x_rows = jnp.pad(x, ((0, 0), (pad, pad), (0, 0), (0, 0))).reshape(N, Hp, WC)
    w_slabs = _build_toeplitz_slabs(weight, W, pad)                 # (K, WC, WC)
    b_row = jnp.tile(bias, W).reshape(1, WC).astype(jnp.float32)
    if compute_dtype is not None:
        # MXU operands only; the streamed tile / residual stay in x.dtype so the
        # identity residual is added exactly.
        w_slabs = w_slabs.astype(compute_dtype)

    in_b = x_rows.dtype.itemsize
    out_b = x.dtype.itemsize
    w_b = w_slabs.dtype.itemsize
    # Streamed (double-buffered) bytes + in-kernel f32 temporaries per image.
    per_img = 2 * Hp * WC * in_b + 2 * H * WC * out_b + 3 * H * WC * 4
    fixed = 2 * K * WC * WC * w_b + 2 * WC * 4 + (2 << 20)
    TN = _choose_images_per_step(N, per_img, fixed, budget_bytes)
    limit = _vmem_limit(fixed + TN * per_img + (4 << 20), cap_bytes)

    out_rows = pl.pallas_call(
        _make_toeplitz_kernel(K, H, pad, compute_dtype),
        out_shape=jax.ShapeDtypeStruct((N, H, WC), x.dtype),
        grid_spec=pltpu.PrefetchScalarGridSpec(
            num_scalar_prefetch=0,
            grid=(pl.cdiv(N, TN),),                    # ragged N -> masked block
            in_specs=[
                pl.BlockSpec((TN, Hp, WC), lambda i: (i, 0, 0)),
                # Grid-invariant weight/bias (same block index every step).
                pl.BlockSpec((K, WC, WC), lambda i: (0, 0, 0)),
                pl.BlockSpec((1, WC), lambda i: (0, 0)),
            ],
            out_specs=pl.BlockSpec((TN, H, WC), lambda i: (i, 0, 0)),
            scratch_shapes=[pltpu.VMEM((TN * H, WC), jnp.float32)],
        ),
        compiler_params=pltpu.CompilerParams(
            dimension_semantics=("parallel",),
            vmem_limit_bytes=limit,
        ),
    )(x_rows, w_slabs, b_row)

    out = out_rows.reshape(N, H, W, Cp)                # contiguous -> free
    return out[..., :C] if Cp != C else out


def _forward_per_tap(x, weight, bias, compute_dtype, budget_bytes, cap_bytes):
    N, H, W, C = x.shape
    Co = weight.shape[0]
    K = weight.shape[2]
    pad = K // 2
    Hp, Wp = H + 2 * pad, W + 2 * pad

    x_pad = jnp.pad(x, ((0, 0), (pad, pad), (pad, pad), (0, 0)))
    # (C_out, C_in, K, K) -> (K*K, C_in, C_out), tap index = di*K + dj
    w_taps = jnp.transpose(weight, (2, 3, 1, 0)).reshape(K * K, C, Co)
    b_row = bias.reshape(1, Co).astype(jnp.float32)
    if compute_dtype is not None:
        w_taps = w_taps.astype(compute_dtype)

    in_b = x.dtype.itemsize
    per_img = 2 * Hp * Wp * C * in_b + 2 * H * W * Co * in_b + 3 * H * W * Co * 4
    fixed = 2 * K * K * C * Co * w_taps.dtype.itemsize + 2 * Co * 4 + (2 << 20)
    TN = _choose_images_per_step(N, per_img, fixed, budget_bytes)
    limit = _vmem_limit(fixed + TN * per_img + (4 << 20), cap_bytes)

    return pl.pallas_call(
        _make_per_tap_kernel(K, H, W, pad, compute_dtype),
        out_shape=jax.ShapeDtypeStruct((N, H, W, Co), x.dtype),
        grid_spec=pltpu.PrefetchScalarGridSpec(
            num_scalar_prefetch=0,
            grid=(pl.cdiv(N, TN),),
            in_specs=[
                pl.BlockSpec((TN, Hp, Wp, C), lambda i: (i, 0, 0, 0)),
                pl.BlockSpec((K * K, C, Co), lambda i: (0, 0, 0)),
                pl.BlockSpec((1, Co), lambda i: (0, 0)),
            ],
            out_specs=pl.BlockSpec((TN, H, W, Co), lambda i: (i, 0, 0, 0)),
            scratch_shapes=[pltpu.VMEM((TN * H * W, Co), jnp.float32)],
        ),
        compiler_params=pltpu.CompilerParams(
            dimension_semantics=("parallel",),
            vmem_limit_bytes=limit,
        ),
    )(x_pad, w_taps, b_row)


def residual_conv_forward(x, weight, bias, *, compute_dtype=None,
                          vmem_budget_bytes=None, toeplitz_max_lanes=512):
    """Residual.forward with model=Conv2d(C, C, K, padding=K//2), down_sample=None,
    mode=torch.add:   y = conv(x) + bias + x.

    x      : (N, H, W, C)  NHWC (no NCHW<->NHWC transposes around the kernel)
    weight : (C_out, C_in, K, K)  PyTorch OIHW layout
    bias   : (C_out,)
    compute_dtype : e.g. jnp.bfloat16 -> MXU operands in bf16, f32 accumulation;
                    streamed tile and identity residual stay in x.dtype.
    """
    N, H, W, C = x.shape
    C_out, C_in, K, Kw = weight.shape
    assert K == Kw and K % 2 == 1
    assert C_in == C and C_out == C, "identity residual needs shape-preserving conv"

    cap = _vmem_capacity_bytes()
    budget = vmem_budget_bytes if vmem_budget_bytes is not None else int(0.6 * cap)
    budget = min(budget, cap - (12 << 20))

    if W * C_out <= toeplitz_max_lanes:
        # Small W*C: block-Toeplitz slab keeps the contraction deep for the MXU.
        return _forward_toeplitz(x, weight, bias, compute_dtype, budget, cap)
    # Large W*C: slab would be K*W^2*C^2 bytes and ~W/K x redundant FLOPs ->
    # K*K per-tap (C_in, C_out) matmuls on shifted views instead.
    return _forward_per_tap(x, weight, bias, compute_dtype, budget, cap)


# ---------------------------------- main ---------------------------------------
if __name__ == "__main__":
    key = jax.random.PRNGKey(0)
    keys = jax.random.split(key, 6)

    def conv_ref(x, w, precision, preferred=None):
        return jax.lax.conv_general_dilated(
            x, w, window_strides=(1, 1), padding="SAME",
            dimension_numbers=("NHWC", "OIHW", "NHWC"),
            precision=precision, preferred_element_type=preferred)

    # ---- case 1: small channels -> Toeplitz path (lane width 64 padded to 128)
    N, H, W, C, K = 2, 16, 16, 4, 3
    x = jax.random.normal(keys[0], (N, H, W, C), dtype=jnp.float32)
    w = jax.random.normal(keys[1], (C, C, K, K), dtype=jnp.float32) / math.sqrt(C * K * K)
    b = jax.random.normal(keys[2], (C,), dtype=jnp.float32) * 0.01

    out = jax.block_until_ready(residual_conv_forward(x, w, b))
    ref = conv_ref(x, w, jax.lax.Precision.HIGHEST) + b.reshape(1, 1, 1, C) + x
    assert out.shape == (N, H, W, C)
    assert jnp.allclose(out, ref, atol=2e-4, rtol=2e-4)

    # ---- case 2: bf16 MXU operands (f32 accumulation, exact f32 residual)
    out_bf = jax.block_until_ready(
        residual_conv_forward(x, w, b, compute_dtype=jnp.bfloat16))
    ref_bf = (conv_ref(x.astype(jnp.bfloat16), w.astype(jnp.bfloat16),
                       jax.lax.Precision.DEFAULT, preferred=jnp.float32)
              + b.reshape(1, 1, 1, C) + x)
    assert jnp.allclose(out_bf, ref_bf, atol=5e-3, rtol=5e-3)

    # ---- case 3: large channel count -> per-tap path (no Toeplitz slab)
    N2, H2, W2, C2 = 2, 8, 8, 128
    x2 = jax.random.normal(keys[3], (N2, H2, W2, C2), dtype=jnp.float32)
    w2 = jax.random.normal(keys[4], (C2, C2, K, K), dtype=jnp.float32) / math.sqrt(C2 * K * K)
    b2 = jax.random.normal(keys[5], (C2,), dtype=jnp.float32) * 0.01

    out2 = jax.block_until_ready(residual_conv_forward(x2, w2, b2))
    ref2 = conv_ref(x2, w2, jax.lax.Precision.HIGHEST) + b2.reshape(1, 1, 1, C2) + x2
    assert out2.shape == (N2, H2, W2, C2)
    assert jnp.allclose(out2, ref2, atol=2e-3, rtol=2e-3)

    print("KERNEL_OK")
</pallas_src>

<mosaic_0001>
module attributes {stable_mosaic.version = 11 : i64} {
  func.func @kernel(%arg0: i32, %arg1: memref<1x18x128xf32, #tpu.memory_space<vmem>>, %arg2: memref<3x128x128xf32, #tpu.memory_space<vmem>>, %arg3: memref<1x128xf32, #tpu.memory_space<vmem>>, %arg4: memref<1x16x128xf32, #tpu.memory_space<vmem>>, %arg5: memref<16x128xf32, #tpu.memory_space<vmem>>) attributes {dimension_semantics = [#tpu.dimension_semantics<parallel>], iteration_bounds = array<i64: 2>, scalar_prefetch = 0 : i64, scratch_operands = 1 : i64, tpu.core_type = #tpu.core_type<tc>, window_params = [{transform_indices = @transform_0, window_bounds = array<i64: 1, 18, 128>}, {pipeline_mode = #tpu.pipeline_mode<synchronous>, transform_indices = @transform_1, window_bounds = array<i64: 3, 128, 128>}, {pipeline_mode = #tpu.pipeline_mode<synchronous>, transform_indices = @transform_2, window_bounds = array<i64: 1, 128>}, {transform_indices = @transform_3, window_bounds = array<i64: 1, 16, 128>}]} {
    %c0 = arith.constant 0 : index
    %c0_0 = arith.constant 0 : index
    %c0_1 = arith.constant 0 : index
    %0 = vector.load %arg1[%c0, %c0_0, %c0_1] : memref<1x18x128xf32, #tpu.memory_space<vmem>>, vector<1x16x128xf32>
    %1 = vector.shape_cast %0 : vector<1x16x128xf32> to vector<16x128xf32>
    %c0_2 = arith.constant 0 : index
    %c0_3 = arith.constant 0 : index
    %c0_4 = arith.constant 0 : index
    %2 = vector.load %arg2[%c0_2, %c0_3, %c0_4] : memref<3x128x128xf32, #tpu.memory_space<vmem>>, vector<1x128x128xf32>
    %3 = vector.shape_cast %2 : vector<1x128x128xf32> to vector<128x128xf32>
    %cst = arith.constant dense<0.000000e+00> : vector<16x128xf32>
    %4 = tpu.matmul %1, %3, %cst {dimension_numbers = #tpu.dot_dimension_numbers<[1], [0], [0], [1], [0, 0, 1, 1], [], []>} : vector<16x128xf32>, vector<128x128xf32>, vector<16x128xf32> -> vector<16x128xf32>
    %c0_5 = arith.constant 0 : index
    %c0_6 = arith.constant 0 : index
    %5 = vector.load %arg5[%c0_5, %c0_6] : memref<16x128xf32, #tpu.memory_space<vmem>>, vector<16x128xf32>
    tpu.vector_store %arg5[%c0_5, %c0_6], %4 {strides = array<i32>} : memref<16x128xf32, #tpu.memory_space<vmem>>, vector<16x128xf32>,
    %c0_7 = arith.constant 0 : index
    %c1 = arith.constant 1 : index
    %c0_8 = arith.constant 0 : index
    %6 = vector.load %arg1[%c0_7, %c1, %c0_8] : memref<1x18x128xf32, #tpu.memory_space<vmem>>, vector<1x16x128xf32>
    %7 = vector.shape_cast %6 : vector<1x16x128xf32> to vector<16x128xf32>
    %c1_9 = arith.constant 1 : index
    %c0_10 = arith.constant 0 : index
    %c0_11 = arith.constant 0 : index
    %8 = vector.load %arg2[%c1_9, %c0_10, %c0_11] : memref<3x128x128xf32, #tpu.memory_space<vmem>>, vector<1x128x128xf32>
    %9 = vector.shape_cast %8 : vector<1x128x128xf32> to vector<128x128xf32>
    %cst_12 = arith.constant dense<0.000000e+00> : vector<16x128xf32>
    %10 = tpu.matmul %7, %9, %cst_12 {dimension_numbers = #tpu.dot_dimension_numbers<[1], [0], [0], [1], [0, 0, 1, 1], [], []>} : vector<16x128xf32>, vector<128x128xf32>, vector<16x128xf32> -> vector<16x128xf32>
    %c0_13 = arith.constant 0 : index
    %c0_14 = arith.constant 0 : index
    %11 = vector.load %arg5[%c0_13, %c0_14] : memref<16x128xf32, #tpu.memory_space<vmem>>, vector<16x128xf32>
    %12 = arith.addf %11, %10 : vector<16x128xf32>
    %c0_15 = arith.constant 0 : index
    %c0_16 = arith.constant 0 : index
    %13 = vector.load %arg5[%c0_15, %c0_16] : memref<16x128xf32, #tpu.memory_space<vmem>>, vector<16x128xf32>
    tpu.vector_store %arg5[%c0_15, %c0_16], %12 {strides = array<i32>} : memref<16x128xf32, #tpu.memory_space<vmem>>, vector<16x128xf32>,
    %c0_17 = arith.constant 0 : index
    %c2 = arith.constant 2 : index
    %c0_18 = arith.constant 0 : index
    %14 = vector.load %arg1[%c0_17, %c2, %c0_18] : memref<1x18x128xf32, #tpu.memory_space<vmem>>, vector<1x16x128xf32>
    %15 = vector.shape_cast %14 : vector<1x16x128xf32> to vector<16x128xf32>
    %c2_19 = arith.constant 2 : index
    %c0_20 = arith.constant 0 : index
    %c0_21 = arith.constant 0 : index
    %16 = vector.load %arg2[%c2_19, %c0_20, %c0_21] : memref<3x128x128xf32, #tpu.memory_space<vmem>>, vector<1x128x128xf32>
    %17 = vector.shape_cast %16 : vector<1x128x128xf32> to vector<128x128xf32>
    %cst_22 = arith.constant dense<0.000000e+00> : vector<16x128xf32>
    %18 = tpu.matmul %15, %17, %cst_22 {dimension_numbers = #tpu.dot_dimension_numbers<[1], [0], [0], [1], [0, 0, 1, 1], [], []>} : vector<16x128xf32>, vector<128x128xf32>, vector<16x128xf32> -> vector<16x128xf32>
    %c0_23 = arith.constant 0 : index
    %c0_24 = arith.constant 0 : index
    %19 = vector.load %arg5[%c0_23, %c0_24] : memref<16x128xf32, #tpu.memory_space<vmem>>, vector<16x128xf32>
    %20 = arith.addf %19, %18 : vector<16x128xf32>
    %c0_25 = arith.constant 0 : index
    %c0_26 = arith.constant 0 : index
    %21 = vector.load %arg5[%c0_25, %c0_26] : memref<16x128xf32, #tpu.memory_space<vmem>>, vector<16x128xf32>
    tpu.vector_store %arg5[%c0_25, %c0_26], %20 {strides = array<i32>} : memref<16x128xf32, #tpu.memory_space<vmem>>, vector<16x128xf32>,
    %c0_27 = arith.constant 0 : index
    %c1_28 = arith.constant 1 : index
    %c0_29 = arith.constant 0 : index
    %22 = vector.load %arg1[%c0_27, %c1_28, %c0_29] : memref<1x18x128xf32, #tpu.memory_space<vmem>>, vector<1x16x128xf32>
    %23 = vector.shape_cast %22 : vector<1x16x128xf32> to vector<16x128xf32>
    %c0_30 = arith.constant 0 : index
    %c0_31 = arith.constant 0 : index
    %24 = vector.load %arg5[%c0_30, %c0_31] : memref<16x128xf32, #tpu.memory_space<vmem>>, vector<16x128xf32>
    %c0_32 = arith.constant 0 : index
    %c0_33 = arith.constant 0 : index
    %25 = vector.load %arg3[%c0_32, %c0_33] : memref<1x128xf32, #tpu.memory_space<vmem>>, vector<1x128xf32>
    %26 = vector.broadcast %25 : vector<1x128xf32> to vector<16x128xf32>
    %27 = arith.addf %24, %26 : vector<16x128xf32>
    %28 = arith.addf %27, %23 : vector<16x128xf32>
    %29 = vector.shape_cast %28 : vector<16x128xf32> to vector<1x16x128xf32>
    %c0_34 = arith.constant 0 : index
    %c0_35 = arith.constant 0 : index
    %c0_36 = arith.constant 0 : index
    %30 = vector.load %arg4[%c0_34, %c0_35, %c0_36] : memref<1x16x128xf32, #tpu.memory_space<vmem>>, vector<1x16x128xf32>
    tpu.vector_store %arg4[%c0_34, %c0_35, %c0_36], %29 {strides = array<i32>} : memref<1x16x128xf32, #tpu.memory_space<vmem>>, vector<1x16x128xf32>,
    return
  }
  func.func @transform_0(%arg0: i32) -> (i32, i32, i32) {
    %c0_i32 = arith.constant 0 : i32
    %c0_i32_0 = arith.constant 0 : i32
    %c0_i32_1 = arith.constant 0 : i32
    return %arg0, %c0_i32, %c0_i32_0 : i32, i32, i32
  }
  func.func @transform_1(%arg0: i32) -> (i32, i32, i32) {
    %c0_i32 = arith.constant 0 : i32
    %c0_i32_0 = arith.constant 0 : i32
    %c0_i32_1 = arith.constant 0 : i32
    %c0_i32_2 = arith.constant 0 : i32
    return %c0_i32, %c0_i32_0, %c0_i32_1 : i32, i32, i32
  }
  func.func @transform_2(%arg0: i32) -> (i32, i32) {
    %c0_i32 = arith.constant 0 : i32
    %c0_i32_0 = arith.constant 0 : i32
    %c0_i32_1 = arith.constant 0 : i32
    return %c0_i32, %c0_i32_0 : i32, i32
  }
  func.func @transform_3(%arg0: i32) -> (i32, i32, i32) {
    %c0_i32 = arith.constant 0 : i32
    %c0_i32_0 = arith.constant 0 : i32
    %c0_i32_1 = arith.constant 0 : i32
    return %arg0, %c0_i32, %c0_i32_0 : i32, i32, i32
  }
}

</mosaic_0001>

<llo_original>
// kernel: tpu_custom_call.1
$region0: #{tpu_custom_call.1}
  #allocation0 [shape = 'u32[]', space=smem, size = 0x4, offset = 0x4, fixed_abs, tag = 'smem constant byte address 0x4 - core index']
  #allocation1 [shape = 'u32[144,128]{1,0:T(1,128)}', space=vmem, size = 0x12000, scoped, tag = 'internal scratch']
  #allocation2 [shape = 'f32[16,128]{1,0:T(8,128)}', space=vmem, size = 0x2000, scoped, tag = 'scratch operand']
  %s0 = inlined_call_operand.vmem [shape: f32[2,18,128], index: 0, kind: input, shape index: {}]
  %s1 = inlined_call_operand.hbm [shape: f32[3,128,128], index: 1, kind: input, shape index: {}]
  %s2 = inlined_call_operand.vmem [shape: f32[1,128], index: 2, kind: input, shape index: {}]
  %s3 = inlined_call_operand.hbm [shape: f32[2,16,128], index: 3, kind: output, shape index: {}]
  %s4 = sld [smem:[#allocation0]]
  $region49: #{tpu_custom_call.1} parent=0
    _
  %s6 = ssub.s32 1, %s4
  %s7 = scalar_select 0, %s6, %s4
  $region1: #{tpu_custom_call.1} parent=0
    #allocation3 [shape = 'u8[196608]{0}', space=vmem, size = 0x30000, scoped, tag = 'input window, operand 1, single buffered']
    #allocation4 [shape = 's32[2]{0}', space=sflag, size = 0x8, scoped, tag = 'scoped memory for tpu_custom_call.1']
    #allocation5 [shape = 's32[2]{0}', space=sflag, size = 0x8, scoped, tag = 'scoped memory for tpu_custom_call.1']
    #allocation6 [shape = 'u8[16384]{0}', space=vmem, size = 0x4000, scoped, tag = 'output window, operand 0']
    %8 = vsyncpa [#allocation4], 0
    %9 = vsyncpa [#allocation5], 0
    %s10 = scalar_lea.sflag [#allocation5], 1
    %11 = vsyncpa %s10, 0
    loop: start=0, step=1, limit=4
    $region2: #{tpu_custom_call.1} parent=1 // loop_pre_header
      _
    $region3: #{tpu_custom_call.1} parent=1 // loop_header
      %s13 = sphi 0, %s17
      %p14 = scmp.ge.s32.totalorder %s13, 4
      %s23 = sphi 0, %s25
      %s26 = sphi 0, %s23
      %s27 = sphi 0, %s26
      %s43 = sphi 0, %s27
      %s47 = sphi 0, %s47
      %s49 = sphi 0, %s47
      %s50 = sphi 0, %s49
      %s64 = sphi 0, %s50
      %s68 = sphi 0, %s68
      %s70 = sphi 0, %s68
      %s71 = sphi 0, %s70
      %s85 = sphi 0, %s71
      %s91 = sphi 0, %s93
      %s94 = sphi 0, %s91
      %s95 = sphi 0, %s94
      %s111 = sphi 0, %s95
    $region4: #{tpu_custom_call.1} parent=1 // loop_header_branch
      %16 = sbr.rel (%p14) target = $region8
    $region5: #{tpu_custom_call.1} parent=1 // loop_body
      %s18 = ssub.s32 %s13, 1
      %s19 = ssub.s32 %s13, 2
      %s20 = sadd.s32 %s13, 1
      %s21 = ssub.s32 %s13, %s20
      %p22 = scmp.eq.s32.totalorder %s21, 0
      %s24 = sadd.s32 %s23, 1
      %s25 = scalar_select %p22, %s23, %s24
      %p28 = pneg %p22
      %p29 = scmp.eq.s32.totalorder %s13, 1
      %p30 = por %p28, %p29
      %p31 = scmp.ne.s32.totalorder %s23, %s26
      %p32 = scmp.eq.s32.totalorder %s13, 0
      %p33 = por %p31, %p32
      %p34 = scmp.ne.s32.totalorder %s23, %s26
      %p35 = scmp.eq.s32.totalorder %s18, 1
      %p36 = por %p34, %p35
      %p37 = scmp.ne.s32.totalorder %s26, %s27
      %p38 = scmp.eq.s32.totalorder %s18, 0
      %p39 = por %p37, %p38
      %p40 = scmp.ne.s32.totalorder %s26, %s27
      %p41 = scmp.eq.s32.totalorder %s19, 1
      %p42 = por %p40, %p41
      %p44 = scmp.ne.s32.totalorder %s27, %s43
      %p45 = scmp.eq.s32.totalorder %s19, 0
      %p46 = por %p44, %p45
      %s48 = sadd.s32 %s47, 1
      %p51 = scmp.eq.s32.totalorder %s13, 1
      %p52 = scmp.ne.s32.totalorder %s47, %s49
      %p53 = scmp.eq.s32.totalorder %s13, 0
      %p54 = por %p52, %p53
      %p55 = scmp.ne.s32.totalorder %s47, %s49
      %p56 = scmp.eq.s32.totalorder %s18, 1
      %p57 = por %p55, %p56
      %p58 = scmp.ne.s32.totalorder %s49, %s50
      %p59 = scmp.eq.s32.totalorder %s18, 0
      %p60 = por %p58, %p59
      %p61 = scmp.ne.s32.totalorder %s49, %s50
      %p62 = scmp.eq.s32.totalorder %s19, 1
      %p63 = por %p61, %p62
      %p65 = scmp.ne.s32.totalorder %s50, %s64
      %p66 = scmp.eq.s32.totalorder %s19, 0
      %p67 = por %p65, %p66
      %s69 = sadd.s32 %s68, 1
      %p72 = scmp.eq.s32.totalorder %s13, 1
      %p73 = scmp.ne.s32.totalorder %s68, %s70
      %p74 = scmp.eq.s32.totalorder %s13, 0
      %p75 = por %p73, %p74
      %p76 = scmp.ne.s32.totalorder %s68, %s70
      %p77 = scmp.eq.s32.totalorder %s18, 1
      %p78 = por %p76, %p77
      %p79 = scmp.ne.s32.totalorder %s70, %s71
      %p80 = scmp.eq.s32.totalorder %s18, 0
      %p81 = por %p79, %p80
      %p82 = scmp.ne.s32.totalorder %s70, %s71
      %p83 = scmp.eq.s32.totalorder %s19, 1
      %p84 = por %p82, %p83
      %p86 = scmp.ne.s32.totalorder %s71, %s85
      %p87 = scmp.eq.s32.totalorder %s19, 0
      %p88 = por %p86, %p87
      %s89 = ssub.s32 %s13, %s20
      %p90 = scmp.eq.s32.totalorder %s89, 0
      %s92 = sadd.s32 %s91, 1
      %s93 = scalar_select %p90, %s91, %s92
      %p96 = pneg %p90
      %p97 = scmp.eq.s32.totalorder %s13, 1
      %p98 = por %p96, %p97
      %p99 = scmp.ne.s32.totalorder %s91, %s94
      %p100 = scmp.eq.s32.totalorder %s13, 0
      %p101 = por %p99, %p100
      %p102 = scmp.ne.s32.totalorder %s91, %s94
      %p103 = scmp.eq.s32.totalorder %s18, 1
      %p104 = por %p102, %p103
      %p105 = scmp.ne.s32.totalorder %s94, %s95
      %p106 = scmp.eq.s32.totalorder %s18, 0
      %p107 = por %p105, %p106
      %p108 = scmp.ne.s32.totalorder %s94, %s95
      %p109 = scmp.eq.s32.totalorder %s19, 1
      %p110 = por %p108, %p109
      %p112 = scmp.ne.s32.totalorder %s95, %s111
      %p113 = scmp.eq.s32.totalorder %s19, 0
      %p114 = por %p112, %p113
      %p115 = scmp.le.s32.totalorder 1, %s13
      %p116 = scmp.lt.s32.totalorder %s13, 3
      %p117 = pnand %p115, %p116
      %p118 = pneg %p117
      // Predicated region
      $region9: #{tpu_custom_call.1} parent=5 // pred_check
        _
      $region10: #{tpu_custom_call.1} parent=5 // pred_check_branch
        %120 = sbr.rel (%p117) target = $region12
      $region11: #{tpu_custom_call.1} parent=5 // pred_region
        %s121 = ssub.s32 %s13, 1
        // Predicated region
        $region13: #{tpu_custom_call.1} parent=11 // pred_check
          %p122 = pneg %p60
        $region14: #{tpu_custom_call.1} parent=11 // pred_check_branch
          %124 = sbr.rel (%p122) target = $region16
        $region15: #{tpu_custom_call.1} parent=11 // pred_region
          %s126 = ssub.s32 6144, 6144
          %127 = vsyncadd [#allocation4], %s126
          %s128 = sshll.u32 [#allocation3], 4
          %s129 = int_to_ptr.vmem [resolvable:$true] %s128
          %134 = dma.hbm_to_vmem [thread:$0]  %s1, 6144, %s129, [#allocation4], 128, 128, 8
        $region16: #{tpu_custom_call.1} parent=11 // pred_fallthru
          _
        // Predicated region
        $region17: #{tpu_custom_call.1} parent=11 // pred_check
          %p135 = pneg %p81
        $region18: #{tpu_custom_call.1} parent=11 // pred_check_branch
          %137 = sbr.rel (%p135) target = $region20
        $region19: #{tpu_custom_call.1} parent=11 // pred_region
          _
        $region20: #{tpu_custom_call.1} parent=11 // pred_fallthru
          _
      $region12: #{tpu_custom_call.1} parent=5 // pred_fallthru
        _
      %p138 = scmp.lt.s32.totalorder %s13, 2
      // Predicated region
      $region21: #{tpu_custom_call.1} parent=5 // pred_check
        %p139 = pneg %p138
      $region22: #{tpu_custom_call.1} parent=5 // pred_check_branch
        %141 = sbr.rel (%p139) target = $region24
      $region23: #{tpu_custom_call.1} parent=5 // pred_region
        // Predicated region
        $region25: #{tpu_custom_call.1} parent=23 // pred_check
          %p142 = pneg %p33
        $region26: #{tpu_custom_call.1} parent=23 // pred_check_branch
          %144 = sbr.rel (%p142) target = $region28
        $region27: #{tpu_custom_call.1} parent=23 // pred_region
          %p145 = scmp.lt.s32.totalorder %s13, 1
          %s146 = scalar_select %p145, %s13, 1
          %s147 = smul.addr %s146, 3
          %s148 = smul.addr %s147, 8
          %s149 = scalar_lea.vmem %s0, %s148
        $region28: #{tpu_custom_call.1} parent=23 // pred_fallthru
          _
      $region24: #{tpu_custom_call.1} parent=5 // pred_fallthru
        _
      %p150 = scmp.le.s32.totalorder 1, %s13
      %p151 = scmp.lt.s32.totalorder %s13, 3
      %p152 = pnand %p150, %p151
      %p153 = pneg %p152
      // Predicated region
      $region29: #{tpu_custom_call.1} parent=5 // pred_check
        _
      $region30: #{tpu_custom_call.1} parent=5 // pred_check_branch
        %155 = sbr.rel (%p152) target = $region32
      $region31: #{tpu_custom_call.1} parent=5 // pred_region
        %s156 = ssub.s32 %s13, 1
        // Predicated region
        $region33: #{tpu_custom_call.1} parent=31 // pred_check
          %p157 = pneg %p60
        $region34: #{tpu_custom_call.1} parent=31 // pred_check_branch
          %159 = sbr.rel (%p157) target = $region36
        $region35: #{tpu_custom_call.1} parent=31 // pred_region
          %160 = dma.done [#allocation4], 6144
        $region36: #{tpu_custom_call.1} parent=31 // pred_fallthru
          _
        %p161 = scmp.lt.s32.totalorder %s18, 1
        %s162 = scalar_select %p161, %s18, 1
        %s163 = smul.addr %s162, 3
        %s164 = smul.addr %s163, 8
        %s165 = scalar_lea.vmem %s0, %s164
        %p166 = pneg %p39
        %p167 = pneg %p36
        %p168 = pneg %p60
        %p169 = pneg %p57
        %p170 = pneg %p81
        %p171 = pneg %p78
        %p172 = pneg %p107
        %p173 = pneg %p104
        %s174 = sand.u32 %s94, 1
        %s175 = scalar_lea.sflag [#allocation5], %s174
        %s176 = sand.u32 %s94, 1
        %s177 = smul.addr %s176, 16
        %s178 = scalar_lea.vmem [#allocation6], %s177
        %p179 = scmp.lt.s32.totalorder %s18, 1
        %s180 = scalar_select %p179, %s18, 1
        %s181 = smul.addr %s180, 3
        %s182 = smul.addr %s181, 8
        %s183 = scalar_lea.vmem %s0, %s182
        %v184 = vld [vmem:[%s183] sm:$0xff]
        %v185 = vld [vmem:[%s183 + $0x8] sm:$0xff]
        %v186 = vld [vmem:[#allocation3] sm:$0xff]
        %v187 = vld [vmem:[#allocation3 + $0x8] sm:$0xff]
        %v188 = vld [vmem:[#allocation3 + $0x10] sm:$0xff]
        %v189 = vld [vmem:[#allocation3 + $0x18] sm:$0xff]
        %v190 = vld [vmem:[#allocation3 + $0x20] sm:$0xff]
        %v191 = vld [vmem:[#allocation3 + $0x28] sm:$0xff]
        %v192 = vld [vmem:[#allocation3 + $0x30] sm:$0xff]
        %v193 = vld [vmem:[#allocation3 + $0x38] sm:$0xff]
        %v194 = vld [vmem:[#allocation3 + $0x40] sm:$0xff]
        %v195 = vld [vmem:[#allocation3 + $0x48] sm:$0xff]
        %v196 = vld [vmem:[#allocation3 + $0x50] sm:$0xff]
        %v197 = vld [vmem:[#allocation3 + $0x58] sm:$0xff]
        %v198 = vld [vmem:[#allocation3 + $0x60] sm:$0xff]
        %v199 = vld [vmem:[#allocation3 + $0x68] sm:$0xff]
        %v200 = vld [vmem:[#allocation3 + $0x70] sm:$0xff]
        %v201 = vld [vmem:[#allocation3 + $0x78] sm:$0xff]
        %202 = vmatprep.subr.mxu0 0.0
        %203 = vmatpush1.msra.mxu0 %v186
        %204 = vmatprep.subr.mxu0 0.0
        %205 = vmatpush1.msra.mxu0 %v187
        %206 = vmatprep.subr.mxu0 0.0
        %207 = vmatpush1.msra.mxu0 %v188
        %208 = vmatprep.subr.mxu0 0.0
        %209 = vmatpush1.msra.mxu0 %v189
        %210 = vmatprep.subr.mxu0 0.0
        %211 = vmatpush1.msra.mxu0 %v190
        %212 = vmatprep.subr.mxu0 0.0
        %213 = vmatpush1.msra.mxu0 %v191
        %214 = vmatprep.subr.mxu0 0.0
        %215 = vmatpush1.msra.mxu0 %v192
        %216 = vmatprep.subr.mxu0 0.0
        %217 = vmatpush1.msra.mxu0 %v193
        %218 = vmatprep.subr.mxu0 0.0
        %219 = vmatpush1.msra.mxu0 %v194
        %220 = vmatprep.subr.mxu0 0.0
        %221 = vmatpush1.msra.mxu0 %v195
        %222 = vmatprep.subr.mxu0 0.0
        %223 = vmatpush1.msra.mxu0 %v196
        %224 = vmatprep.subr.mxu0 0.0
        %225 = vmatpush1.msra.mxu0 %v197
        %226 = vmatprep.subr.mxu0 0.0
        %227 = vmatpush1.msra.mxu0 %v198
        %228 = vmatprep.subr.mxu0 0.0
        %229 = vmatpush1.msra.mxu0 %v199
        %230 = vmatprep.subr.mxu0 0.0
        %231 = vmatpush1.msra.mxu0 %v200
        %232 = vmatprep.subr.mxu0 0.0
        %233 = vmatpush1.msra.mxu0 %v201
        %234 = vmatprep.subr.mxu0 0.0
        %235 = vmatpush1.msra.mxu0 0.0
        %236 = vmatprep.subr.mxu0 0.0
        %237 = vmatpush1.msra.mxu0 0.0
        %238 = vmatprep.subr.mxu0 0.0
        %239 = vmatpush1.msra.mxu0 0.0
        %240 = vmatprep.subr.mxu0 0.0
        %241 = vmatpush1.msra.mxu0 0.0
        %242 = vmatprep.subr.mxu0 0.0
        %243 = vmatpush1.msra.mxu0 0.0
        %244 = vmatprep.subr.mxu0 0.0
        %245 = vmatpush1.msra.mxu0 0.0
        %246 = vmatprep.subr.mxu0 0.0
        %247 = vmatpush1.msra.mxu0 0.0
        %248 = vmatprep.subr.mxu0 0.0
        %249 = vmatpush1.msra.mxu0 0.0
        %250 = vmatprep.subr.mxu0 0.0
        %251 = vmatpush1.msra.mxu0 0.0
        %252 = vmatprep.subr.mxu0 0.0
        %253 = vmatpush1.msra.mxu0 0.0
        %254 = vmatprep.subr.mxu0 0.0
        %255 = vmatpush1.msra.mxu0 0.0
        %256 = vmatprep.subr.mxu0 0.0
        %257 = vmatpush1.msra.mxu0 0.0
        %258 = vmatprep.subr.mxu0 0.0
        %259 = vmatpush1.msra.mxu0 0.0
        %260 = vmatprep.subr.mxu0 0.0
        %261 = vmatpush1.msra.mxu0 0.0
        %262 = vmatprep.subr.mxu0 0.0
        %263 = vmatpush1.msra.mxu0 0.0
        %264 = vmatprep.subr.mxu0 0.0
        %265 = vmatpush1.msra.mxu0 0.0
        %266 = vmatprep.mubr.f32.mxu0 0.0
        %267 = vmatmul.mubr.f32.gmra.mrb[0].mxu0 %v184
        %v268 = vpop.f32.mrb[0].mxu0
        %v269 = vadd.f32 0.0, %v268
        %v270 = vpop.f32.mrb[0].mxu0
        %271 = vmatprep.mubr.f32.mxu0 0.0
        %272 = vmatmul.mubr.f32.gmra.mrb[0].mxu0 %v185
        %v273 = vpop.f32.mrb[0].mxu0
        %v274 = vadd.f32 0.0, %v273
        %v275 = vpop.f32.mrb[0].mxu0
        %276 = vdwg.mxu0
        %277 = vst [vmem:[#allocation2] sm:$0xff] %v269
        %278 = vst [vmem:[#allocation2 + $0x8] sm:$0xff] %v274
        %v279 = vld [vmem:[%s183 + $0x1] sm:$0xff]
        %v280 = vld [vmem:[%s183 + $0x9] sm:$0xff]
        %s281 = scalar_lea.vmem [#allocation3], 128
        %v282 = vld [vmem:[%s281] sm:$0xff]
        %v283 = vld [vmem:[%s281 + $0x8] sm:$0xff]
        %v284 = vld [vmem:[%s281 + $0x10] sm:$0xff]
        %v285 = vld [vmem:[%s281 + $0x18] sm:$0xff]
        %v286 = vld [vmem:[%s281 + $0x20] sm:$0xff]
        %v287 = vld [vmem:[%s281 + $0x28] sm:$0xff]
        %v288 = vld [vmem:[%s281 + $0x30] sm:$0xff]
        %v289 = vld [vmem:[%s281 + $0x38] sm:$0xff]
        %v290 = vld [vmem:[%s281 + $0x40] sm:$0xff]
        %v291 = vld [vmem:[%s281 + $0x48] sm:$0xff]
        %v292 = vld [vmem:[%s281 + $0x50] sm:$0xff]
        %v293 = vld [vmem:[%s281 + $0x58] sm:$0xff]
        %v294 = vld [vmem:[%s281 + $0x60] sm:$0xff]
        %v295 = vld [vmem:[%s281 + $0x68] sm:$0xff]
        %v296 = vld [vmem:[%s281 + $0x70] sm:$0xff]
        %v297 = vld [vmem:[%s281 + $0x78] sm:$0xff]
        %298 = vmatprep.subr.mxu0 0.0
        %299 = vmatpush1.msra.mxu0 %v282
        %300 = vmatprep.subr.mxu0 0.0
        %301 = vmatpush1.msra.mxu0 %v283
        %302 = vmatprep.subr.mxu0 0.0
        %303 = vmatpush1.msra.mxu0 %v284
        %304 = vmatprep.subr.mxu0 0.0
        %305 = vmatpush1.msra.mxu0 %v285
        %306 = vmatprep.subr.mxu0 0.0
        %307 = vmatpush1.msra.mxu0 %v286
        %308 = vmatprep.subr.mxu0 0.0
        %309 = vmatpush1.msra.mxu0 %v287
        %310 = vmatprep.subr.mxu0 0.0
        %311 = vmatpush1.msra.mxu0 %v288
        %312 = vmatprep.subr.mxu0 0.0
        %313 = vmatpush1.msra.mxu0 %v289
        %314 = vmatprep.subr.mxu0 0.0
        %315 = vmatpush1.msra.mxu0 %v290
        %316 = vmatprep.subr.mxu0 0.0
        %317 = vmatpush1.msra.mxu0 %v291
        %318 = vmatprep.subr.mxu0 0.0
        %319 = vmatpush1.msra.mxu0 %v292
        %320 = vmatprep.subr.mxu0 0.0
        %321 = vmatpush1.msra.mxu0 %v293
        %322 = vmatprep.subr.mxu0 0.0
        %323 = vmatpush1.msra.mxu0 %v294
        %324 = vmatprep.subr.mxu0 0.0
        %325 = vmatpush1.msra.mxu0 %v295
        %326 = vmatprep.subr.mxu0 0.0
        %327 = vmatpush1.msra.mxu0 %v296
        %328 = vmatprep.subr.mxu0 0.0
        %329 = vmatpush1.msra.mxu0 %v297
        %330 = vmatprep.subr.mxu0 0.0
        %331 = vmatpush1.msra.mxu0 0.0
        %332 = vmatprep.subr.mxu0 0.0
        %333 = vmatpush1.msra.mxu0 0.0
        %334 = vmatprep.subr.mxu0 0.0
        %335 = vmatpush1.msra.mxu0 0.0
        %336 = vmatprep.subr.mxu0 0.0
        %337 = vmatpush1.msra.mxu0 0.0
        %338 = vmatprep.subr.mxu0 0.0
        %339 = vmatpush1.msra.mxu0 0.0
        %340 = vmatprep.subr.mxu0 0.0
        %341 = vmatpush1.msra.mxu0 0.0
        %342 = vmatprep.subr.mxu0 0.0
        %343 = vmatpush1.msra.mxu0 0.0
        %344 = vmatprep.subr.mxu0 0.0
        %345 = vmatpush1.msra.mxu0 0.0
        %346 = vmatprep.subr.mxu0 0.0
        %347 = vmatpush1.msra.mxu0 0.0
        %348 = vmatprep.subr.mxu0 0.0
        %349 = vmatpush1.msra.mxu0 0.0
        %350 = vmatprep.subr.mxu0 0.0
        %351 = vmatpush1.msra.mxu0 0.0
        %352 = vmatprep.subr.mxu0 0.0
        %353 = vmatpush1.msra.mxu0 0.0
        %354 = vmatprep.subr.mxu0 0.0
        %355 = vmatpush1.msra.mxu0 0.0
        %356 = vmatprep.subr.mxu0 0.0
        %357 = vmatpush1.msra.mxu0 0.0
        %358 = vmatprep.subr.mxu0 0.0
        %359 = vmatpush1.msra.mxu0 0.0
        %360 = vmatprep.subr.mxu0 0.0
        %361 = vmatpush1.msra.mxu0 0.0
        %362 = vmatprep.mubr.f32.mxu0 0.0
        %363 = vmatmul.mubr.f32.gmra.mrb[0].mxu0 %v279
        %v364 = vpop.f32.mrb[0].mxu0
        %v365 = vadd.f32 0.0, %v364
        %v366 = vpop.f32.mrb[0].mxu0
        %367 = vmatprep.mubr.f32.mxu0 0.0
        %368 = vmatmul.mubr.f32.gmra.mrb[0].mxu0 %v280
        %v369 = vpop.f32.mrb[0].mxu0
        %v370 = vadd.f32 0.0, %v369
        %v371 = vpop.f32.mrb[0].mxu0
        %372 = vdwg.mxu0
        %v373 = vld [vmem:[#allocation2] sm:$0xff]
        %v374 = vld [vmem:[#allocation2 + $0x8] sm:$0xff]
        %v375 = vadd.f32 %v373, %v365
        %v376 = vadd.f32 %v374, %v370
        %377 = vst [vmem:[#allocation2] sm:$0xff] %v375
        %378 = vst [vmem:[#allocation2 + $0x8] sm:$0xff] %v376
        %v379 = vld [vmem:[%s183 + $0x2] sm:$0xff]
        %v380 = vld [vmem:[%s183 + $0xa] sm:$0xff]
        %s381 = scalar_lea.vmem [#allocation3], 256
        %v382 = vld [vmem:[%s381] sm:$0xff]
        %v383 = vld [vmem:[%s381 + $0x8] sm:$0xff]
        %v384 = vld [vmem:[%s381 + $0x10] sm:$0xff]
        %v385 = vld [vmem:[%s381 + $0x18] sm:$0xff]
        %v386 = vld [vmem:[%s381 + $0x20] sm:$0xff]
        %v387 = vld [vmem:[%s381 + $0x28] sm:$0xff]
        %v388 = vld [vmem:[%s381 + $0x30] sm:$0xff]
        %v389 = vld [vmem:[%s381 + $0x38] sm:$0xff]
        %v390 = vld [vmem:[%s381 + $0x40] sm:$0xff]
        %v391 = vld [vmem:[%s381 + $0x48] sm:$0xff]
        %v392 = vld [vmem:[%s381 + $0x50] sm:$0xff]
        %v393 = vld [vmem:[%s381 + $0x58] sm:$0xff]
        %v394 = vld [vmem:[%s381 + $0x60] sm:$0xff]
        %v395 = vld [vmem:[%s381 + $0x68] sm:$0xff]
        %v396 = vld [vmem:[%s381 + $0x70] sm:$0xff]
        %v397 = vld [vmem:[%s381 + $0x78] sm:$0xff]
        %398 = vmatprep.subr.mxu0 0.0
        %399 = vmatpush1.msra.mxu0 %v382
        %400 = vmatprep.subr.mxu0 0.0
        %401 = vmatpush1.msra.mxu0 %v383
        %402 = vmatprep.subr.mxu0 0.0
        %403 = vmatpush1.msra.mxu0 %v384
        %404 = vmatprep.subr.mxu0 0.0
        %405 = vmatpush1.msra.mxu0 %v385
        %406 = vmatprep.subr.mxu0 0.0
        %407 = vmatpush1.msra.mxu0 %v386
        %408 = vmatprep.subr.mxu0 0.0
        %409 = vmatpush1.msra.mxu0 %v387
        %410 = vmatprep.subr.mxu0 0.0
        %411 = vmatpush1.msra.mxu0 %v388
        %412 = vmatprep.subr.mxu0 0.0
        %413 = vmatpush1.msra.mxu0 %v389
        %414 = vmatprep.subr.mxu0 0.0
        %415 = vmatpush1.msra.mxu0 %v390
        %416 = vmatprep.subr.mxu0 0.0
        %417 = vmatpush1.msra.mxu0 %v391
        %418 = vmatprep.subr.mxu0 0.0
        %419 = vmatpush1.msra.mxu0 %v392
        %420 = vmatprep.subr.mxu0 0.0
        %421 = vmatpush1.msra.mxu0 %v393
        %422 = vmatprep.subr.mxu0 0.0
        %423 = vmatpush1.msra.mxu0 %v394
        %424 = vmatprep.subr.mxu0 0.0
        %425 = vmatpush1.msra.mxu0 %v395
        %426 = vmatprep.subr.mxu0 0.0
        %427 = vmatpush1.msra.mxu0 %v396
        %428 = vmatprep.subr.mxu0 0.0
        %429 = vmatpush1.msra.mxu0 %v397
        %430 = vmatprep.subr.mxu0 0.0
        %431 = vmatpush1.msra.mxu0 0.0
        %432 = vmatprep.subr.mxu0 0.0
        %433 = vmatpush1.msra.mxu0 0.0
        %434 = vmatprep.subr.mxu0 0.0
        %435 = vmatpush1.msra.mxu0 0.0
        %436 = vmatprep.subr.mxu0 0.0
        %437 = vmatpush1.msra.mxu0 0.0
        %438 = vmatprep.subr.mxu0 0.0
        %439 = vmatpush1.msra.mxu0 0.0
        %440 = vmatprep.subr.mxu0 0.0
        %441 = vmatpush1.msra.mxu0 0.0
        %442 = vmatprep.subr.mxu0 0.0
        %443 = vmatpush1.msra.mxu0 0.0
        %444 = vmatprep.subr.mxu0 0.0
        %445 = vmatpush1.msra.mxu0 0.0
        %446 = vmatprep.subr.mxu0 0.0
        %447 = vmatpush1.msra.mxu0 0.0
        %448 = vmatprep.subr.mxu0 0.0
        %449 = vmatpush1.msra.mxu0 0.0
        %450 = vmatprep.subr.mxu0 0.0
        %451 = vmatpush1.msra.mxu0 0.0
        %452 = vmatprep.subr.mxu0 0.0
        %453 = vmatpush1.msra.mxu0 0.0
        %454 = vmatprep.subr.mxu0 0.0
        %455 = vmatpush1.msra.mxu0 0.0
        %456 = vmatprep.subr.mxu0 0.0
        %457 = vmatpush1.msra.mxu0 0.0
        %458 = vmatprep.subr.mxu0 0.0
        %459 = vmatpush1.msra.mxu0 0.0
        %460 = vmatprep.subr.mxu0 0.0
        %461 = vmatpush1.msra.mxu0 0.0
        %462 = vmatprep.mubr.f32.mxu0 0.0
        %463 = vmatmul.mubr.f32.gmra.mrb[0].mxu0 %v379
        %v464 = vpop.f32.mrb[0].mxu0
        %v465 = vadd.f32 0.0, %v464
        %v466 = vpop.f32.mrb[0].mxu0
        %467 = vmatprep.mubr.f32.mxu0 0.0
        %468 = vmatmul.mubr.f32.gmra.mrb[0].mxu0 %v380
        %v469 = vpop.f32.mrb[0].mxu0
        %v470 = vadd.f32 0.0, %v469
        %v471 = vpop.f32.mrb[0].mxu0
        %472 = vdwg.mxu0
        %v473 = vld [vmem:[#allocation2] sm:$0xff]
        %v474 = vld [vmem:[#allocation2 + $0x8] sm:$0xff]
        %v475 = vadd.f32 %v473, %v465
        %v476 = vadd.f32 %v474, %v470
        %477 = vst [vmem:[#allocation2] sm:$0xff] %v475
        %478 = vst [vmem:[#allocation2 + $0x8] sm:$0xff] %v476
        %v479 = vld [vmem:[%s183 + $0x1] sm:$0xff]
        %v480 = vld [vmem:[%s183 + $0x9] sm:$0xff]
        %v481 = vld [vmem:[#allocation2] sm:$0xff]
        %v482 = vld [vmem:[#allocation2 + $0x8] sm:$0xff]
        %v483 = vld [vmem:[%s2] sm:$0x1]
        %v485 = vlaneseq
        %v486 = vshrl.u32 %v485, 7
        %v487 = vsub.s32 0, %v486
        %v488 = vrot.slane %v483, %v487
        %v490 = vadd.f32 %v481, %v488
        %v491 = vadd.f32 %v482, %v488
        %v492 = vadd.f32 %v490, %v479
        %v493 = vadd.f32 %v491, %v480
        %494 = vst [vmem:[%s178] sm:$0xff] %v492
        %495 = vst [vmem:[%s178 + $0x8] sm:$0xff] %v493
        %s496 = sand.u32 %s94, 1
        %s497 = scalar_lea.sflag [#allocation5], %s496
        %s498 = sand.u32 %s94, 1
        %s499 = smul.addr %s498, 16
        %s500 = scalar_lea.vmem [#allocation6], %s499
        // Predicated region
        $region37: #{tpu_custom_call.1} parent=31 // pred_check
          %p501 = pneg %p104
        $region38: #{tpu_custom_call.1} parent=31 // pred_check_branch
          %503 = sbr.rel (%p501) target = $region40
        $region39: #{tpu_custom_call.1} parent=31 // pred_region
          %s505 = ssub.s32 256, 256
          %506 = vsyncadd %s497, %s505
          %s507 = smul.addr %s18, 2
          %s508 = smul.addr %s507, 128
          %s509 = scalar_lea.hbm %s3, %s508
          %s510 = sshll.u32 %s500, 4
          %s511 = int_to_ptr.vmem [resolvable:$true] %s510
          %516 = dma.vmem_to_hbm [thread:$0]  %s511, 256, %s509, %s497, 128, 128, 8
        $region40: #{tpu_custom_call.1} parent=31 // pred_fallthru
          _
      $region32: #{tpu_custom_call.1} parent=5 // pred_fallthru
        _
      %p517 = scmp.le.s32.totalorder 2, %s13
      // Predicated region
      $region41: #{tpu_custom_call.1} parent=5 // pred_check
        %p518 = pneg %p517
      $region42: #{tpu_custom_call.1} parent=5 // pred_check_branch
        %520 = sbr.rel (%p518) target = $region44
      $region43: #{tpu_custom_call.1} parent=5 // pred_region
        %s521 = ssub.s32 %s13, 2
        // Predicated region
        $region45: #{tpu_custom_call.1} parent=43 // pred_check
          %p522 = pneg %p110
        $region46: #{tpu_custom_call.1} parent=43 // pred_check_branch
          %524 = sbr.rel (%p522) target = $region48
        $region47: #{tpu_custom_call.1} parent=43 // pred_region
          %s525 = sand.u32 %s95, 1
          %s526 = scalar_lea.sflag [#allocation5], %s525
          %s527 = sand.u32 %s95, 1
          %s528 = smul.addr %s527, 16
          %s529 = scalar_lea.vmem [#allocation6], %s528
          %530 = dma.done %s526, 256
        $region48: #{tpu_custom_call.1} parent=43 // pred_fallthru
          _
      $region44: #{tpu_custom_call.1} parent=5 // pred_fallthru
        _
    $region6: #{tpu_custom_call.1} parent=1 // loop_footer
      %s17 = sadd.s32 1, %s13
    $region7: #{tpu_custom_call.1} parent=1 // loop_footer_branch
      %12 = sbr.rel target = $region3
    $region8: #{tpu_custom_call.1} parent=1 // loop_exit
      _
    %531 = vsyncpa [#allocation4], 1
    %s532 = scalar_lea.sflag [#allocation4], 1
    %533 = vsyncpa %s532, 1
    %534 = vsyncpa [#allocation5], 1
    %s535 = scalar_lea.sflag [#allocation5], 1
    %536 = vsyncpa %s535, 1

</llo_original>
